<compile_context>
chip_gen: v5e
topology: v5e:2x2
jax: 0.10.0
libtpu: 0.0.40
codegen_flags: <defaults>
</compile_context>

<pallas_src>
import functools
import math

import jax
import jax.numpy as jnp
from jax.experimental import pallas as pl
from jax.experimental.pallas import tpu as pltpu


_VMEM_LIMIT_BYTES = 48 * 1024 * 1024   # < 64 MiB physical on v7x, < 128 MiB on v5e/v6e
_SQRT_2 = math.sqrt(2.0)


# --------------------------------------------------------------------------
# helpers
# --------------------------------------------------------------------------
def _sublane(itemsize):
    # sublane packing: 8 rows for 4-byte, 16 for 2-byte, 32 for 1-byte dtypes
    return {4: 8, 2: 16, 1: 32}.get(itemsize, 8)


def _pick_block_rows(rows, row_width_elems, itemsize, target_bytes):
    """Largest row tile (multiple of the sublane packing) with ~target_bytes/stream."""
    sub = _sublane(itemsize)
    br = (target_bytes // max(1, row_width_elems * itemsize)) // sub * sub
    br = max(sub, br)
    rows_up = ((rows + sub - 1) // sub) * sub
    return int(min(br, rows_up))


def _erf(x):
    # Abramowitz & Stegun 7.1.26 polynomial (|err| < 1.5e-7); uses only ops with
    # guaranteed Mosaic lowerings (abs/sign/exp/mul/add/div).
    a1, a2, a3, a4, a5 = (0.254829592, -0.284496736, 1.421413741,
                          -1.453152027, 1.061405429)
    p = 0.3275911
    s = jnp.sign(x)
    z = jnp.abs(x)
    t = 1.0 / (1.0 + p * z)
    poly = ((((a5 * t + a4) * t + a3) * t + a2) * t + a1) * t
    return s * (1.0 - poly * jnp.exp(-z * z))


def _gelu(x):
    return x * 0.5 * (1.0 + _erf(x / _SQRT_2))


# --------------------------------------------------------------------------
# kernels
# --------------------------------------------------------------------------
def _linear_kernel(x_ref, w_ref, b_ref, o_ref, *, act):
    x = x_ref[...].astype(jnp.float32)            # (bm, K)
    w = w_ref[...].astype(jnp.float32)            # (K, bn)
    y = jnp.dot(x, w, preferred_element_type=jnp.float32)
    y = y + b_ref[...].astype(jnp.float32)        # (1, bn) broadcast
    if act == "gelu":
        y = _gelu(y)
    o_ref[...] = y.astype(o_ref.dtype)


def _attention_kernel(q_ref, k_ref, v_ref, mask_ref, o_ref, *, scale):
    q = q_ref[0, 0].astype(jnp.float32)           # (S, D)
    k = k_ref[0, 0].astype(jnp.float32)           # (S, D)
    v = v_ref[0, 0].astype(jnp.float32)           # (S, D)
    s = jax.lax.dot_general(q, k, (((1,), (1,)), ((), ())),
                            preferred_element_type=jnp.float32) * scale  # (S, S)
    keep = mask_ref[0] == 1                       # (1, S) over the key axis
    s = jnp.where(keep, s, jnp.finfo(jnp.float32).min)
    s_max = jnp.max(s, axis=-1, keepdims=True)
    p = jnp.exp(s - s_max)
    p = p / jnp.sum(p, axis=-1, keepdims=True)
    o = jnp.dot(p, v, preferred_element_type=jnp.float32)
    o_ref[0, 0] = o.astype(o_ref.dtype)


def _residual_layernorm_kernel(x_ref, r_ref, g_ref, b_ref, o_ref, *, eps):
    t = x_ref[...].astype(jnp.float32) + r_ref[...].astype(jnp.float32)
    u = jnp.mean(t, axis=-1, keepdims=True)
    tc = t - u
    var = jnp.mean(tc * tc, axis=-1, keepdims=True)   # biased variance (PyTorch semantics)
    y = tc * jax.lax.rsqrt(var + eps)
    o_ref[...] = (g_ref[...].astype(jnp.float32) * y
                  + b_ref[...].astype(jnp.float32)).astype(o_ref.dtype)


# --------------------------------------------------------------------------
# pallas_call wrappers
# --------------------------------------------------------------------------
def linear(x2, w_t, b, act=None):
    """x2: (R, K), w_t: (K, N) (K-major), b: (N,) -> (R, N)."""
    R, K = x2.shape
    _, N = w_t.shape
    itemsize = jnp.dtype(x2.dtype).itemsize
    bn = min(N, 512) if N % 128 == 0 else N
    bm = _pick_block_rows(R, K + bn, itemsize, target_bytes=2 << 20)
    grid = (pl.cdiv(R, bm), pl.cdiv(N, bn))
    return pl.pallas_call(
        functools.partial(_linear_kernel, act=act),
        out_shape=jax.ShapeDtypeStruct((R, N), x2.dtype),
        grid_spec=pltpu.PrefetchScalarGridSpec(
            num_scalar_prefetch=0,
            grid=grid,
            in_specs=[
                pl.BlockSpec((bm, K), lambda i, j: (i, 0)),
                pl.BlockSpec((K, bn), lambda i, j: (0, j)),
                pl.BlockSpec((1, bn), lambda i, j: (0, j)),
            ],
            out_specs=pl.BlockSpec((bm, bn), lambda i, j: (i, j)),
        ),
        compiler_params=pltpu.CompilerParams(
            dimension_semantics=("parallel", "parallel"),
            vmem_limit_bytes=_VMEM_LIMIT_BYTES),
    )(x2, w_t, b.reshape(1, N))


def multi_head_attention(q, k, v, mask3):
    """q/k/v: (B, H, S, D); mask3: (B, 1, S) int (1 = attend)."""
    B, H, S, D = q.shape
    scale = 1.0 / math.sqrt(D)
    qkv_spec = pl.BlockSpec((1, 1, S, D), lambda b, h: (b, h, 0, 0))
    return pl.pallas_call(
        functools.partial(_attention_kernel, scale=scale),
        out_shape=jax.ShapeDtypeStruct((B, H, S, D), q.dtype),
        grid_spec=pltpu.PrefetchScalarGridSpec(
            num_scalar_prefetch=0,
            grid=(B, H),
            in_specs=[
                qkv_spec, qkv_spec, qkv_spec,
                pl.BlockSpec((1, 1, S), lambda b, h: (b, 0, 0)),
            ],
            out_specs=pl.BlockSpec((1, 1, S, D), lambda b, h: (b, h, 0, 0)),
        ),
        compiler_params=pltpu.CompilerParams(
            dimension_semantics=("parallel", "parallel"),
            vmem_limit_bytes=_VMEM_LIMIT_BYTES),
    )(q, k, v, mask3)


def residual_layer_norm(x2, res2, gamma, beta, *, eps=1e-12):
    """LayerNorm(x2 + res2) over the last axis; x2/res2: (R, H)."""
    R, H = x2.shape
    itemsize = jnp.dtype(x2.dtype).itemsize
    bm = _pick_block_rows(R, H, itemsize, target_bytes=4 << 20)
    grid = (pl.cdiv(R, bm),)           # no padding copy; tail block is masked
    cost = pl.CostEstimate(flops=int(10 * R * H),
                           transcendentals=int(R),
                           bytes_accessed=int((3 * R * H + 2 * H) * itemsize))
    return pl.pallas_call(
        functools.partial(_residual_layernorm_kernel, eps=eps),
        out_shape=jax.ShapeDtypeStruct((R, H), x2.dtype),
        grid_spec=pltpu.PrefetchScalarGridSpec(
            num_scalar_prefetch=0,
            grid=grid,
            in_specs=[
                pl.BlockSpec((bm, H), lambda i: (i, 0)),
                pl.BlockSpec((bm, H), lambda i: (i, 0)),
                pl.BlockSpec((1, H), lambda i: (0, 0)),
                pl.BlockSpec((1, H), lambda i: (0, 0)),
            ],
            out_specs=pl.BlockSpec((bm, H), lambda i: (i, 0)),
        ),
        compiler_params=pltpu.CompilerParams(
            dimension_semantics=("parallel",),
            vmem_limit_bytes=_VMEM_LIMIT_BYTES),
        cost_estimate=cost,
    )(x2, res2, gamma.reshape(1, H), beta.reshape(1, H))


# --------------------------------------------------------------------------
# full Layer forward
# --------------------------------------------------------------------------
def bert_layer_forward(x, attention_mask, params, *, num_heads,
                       variance_epsilon=1e-12):
    """Forward pass of the BERT `Layer` module. Dropout = identity (eval mode)."""
    B, S, H = x.shape
    Dh = H // num_heads
    R = B * S
    x2 = x.reshape(R, H)

    # Fused QKV projection: one pass over x instead of three.
    w_qkv = jnp.concatenate(
        [params["wq"].T, params["wk"].T, params["wv"].T], axis=1)   # (H, 3H)
    b_qkv = jnp.concatenate([params["bq"], params["bk"], params["bv"]])
    qkv = linear(x2, w_qkv, b_qkv)                                   # (R, 3H)
    q, k, v = jnp.split(qkv, 3, axis=1)

    def split_heads(t):
        return t.reshape(B, S, num_heads, Dh).transpose(0, 2, 1, 3)  # (B,h,S,D)

    mask3 = attention_mask.reshape(B, 1, S).astype(jnp.int32)
    a = multi_head_attention(split_heads(q), split_heads(k), split_heads(v), mask3)
    a = a.transpose(0, 2, 1, 3).reshape(R, H)                        # merge heads

    a = linear(a, params["wo"].T, params["bo"])
    # TODO(synk): training-mode dropout (attention probs / attn_out / mlp) not implemented; identity at inference.
    a = residual_layer_norm(a, x2, params["g1"], params["b1"], eps=variance_epsilon)

    h = linear(a, params["we"].T, params["be"], act="gelu")          # fused exact GELU
    m = linear(h, params["wc"].T, params["bc"])
    out = residual_layer_norm(m, a, params["g2"], params["b2"], eps=variance_epsilon)
    return out.reshape(B, S, H)


# --------------------------------------------------------------------------
# pure-JAX reference (mirrors the PyTorch module math)
# --------------------------------------------------------------------------
def reference_forward(x, attention_mask, params, *, num_heads,
                      variance_epsilon=1e-12):
    hp = jax.lax.Precision.HIGHEST
    B, S, H = x.shape
    Dh = H // num_heads

    def lin(t, w, b):                   # w in torch layout (out, in)
        return jnp.einsum("bsk,nk->bsn", t, w, precision=hp) + b

    def ln(t, g, b):
        u = t.mean(-1, keepdims=True)
        s = ((t - u) ** 2).mean(-1, keepdims=True)
        return g * ((t - u) / jnp.sqrt(s + variance_epsilon)) + b

    def split(t):
        return t.reshape(B, S, num_heads, Dh).transpose(0, 2, 1, 3)

    q = split(lin(x, params["wq"], params["bq"]))
    k = split(lin(x, params["wk"], params["bk"]))
    v = split(lin(x, params["wv"], params["bv"]))
    s = jnp.einsum("bhqd,bhkd->bhqk", q, k, precision=hp) / math.sqrt(Dh)
    keep = (attention_mask == 1)[:, None, None, :]
    s = jnp.where(keep, s, -jnp.inf)
    p = jax.nn.softmax(s, axis=-1)
    a = jnp.einsum("bhqk,bhkd->bhqd", p, v, precision=hp)
    a = a.transpose(0, 2, 1, 3).reshape(B, S, H)
    a = lin(a, params["wo"], params["bo"])
    a = ln(a + x, params["g1"], params["b1"])
    h = lin(a, params["we"], params["be"])
    h = h * 0.5 * (1.0 + jax.scipy.special.erf(h / _SQRT_2))
    m = lin(h, params["wc"], params["bc"])
    return ln(m + a, params["g2"], params["b2"])


# --------------------------------------------------------------------------
# demo / correctness check
# --------------------------------------------------------------------------
if __name__ == "__main__":
    key = jax.random.PRNGKey(0)
    batch, seq, hidden, num_heads, intermediate = 2, 8, 32, 4, 64
    keys = jax.random.split(key, 14)

    def wgt(i, shape, scale=0.05):
        return scale * jax.random.normal(keys[i], shape, jnp.float32)

    params = dict(
        wq=wgt(0, (hidden, hidden)), bq=wgt(1, (hidden,), 0.02),
        wk=wgt(2, (hidden, hidden)), bk=wgt(3, (hidden,), 0.02),
        wv=wgt(4, (hidden, hidden)), bv=wgt(5, (hidden,), 0.02),
        wo=wgt(6, (hidden, hidden)), bo=wgt(7, (hidden,), 0.02),
        we=wgt(8, (intermediate, hidden)), be=wgt(9, (intermediate,), 0.02),
        wc=wgt(10, (hidden, intermediate)), bc=wgt(11, (hidden,), 0.02),
        g1=jnp.ones((hidden,), jnp.float32), b1=jnp.zeros((hidden,), jnp.float32),
        g2=jnp.ones((hidden,), jnp.float32), b2=jnp.zeros((hidden,), jnp.float32),
    )
    x = jax.random.normal(keys[12], (batch, seq, hidden), jnp.float32)
    attention_mask = jnp.ones((batch, seq), jnp.int32).at[1, 6:].set(0)

    y = bert_layer_forward(x, attention_mask, params, num_heads=num_heads)
    y = jax.block_until_ready(y)

    ref = reference_forward(x, attention_mask, params, num_heads=num_heads)
    max_err = float(jnp.max(jnp.abs(y - ref)))
    assert y.shape == x.shape
    assert jnp.allclose(y, ref, atol=2e-3, rtol=2e-3), f"mismatch vs reference: {max_err}"
    print("KERNEL_OK")
</pallas_src>

<mosaic_0001>
module attributes {stable_mosaic.version = 11 : i64} {
  func.func @_linear_kernel(%arg0: i32, %arg1: i32, %arg2: memref<16x32xf32, #tpu.memory_space<vmem>>, %arg3: memref<32x96xf32, #tpu.memory_space<vmem>>, %arg4: memref<1x96xf32, #tpu.memory_space<vmem>>, %arg5: memref<16x96xf32, #tpu.memory_space<vmem>>) attributes {dimension_semantics = [#tpu.dimension_semantics<parallel>, #tpu.dimension_semantics<parallel>], iteration_bounds = array<i64: 1, 1>, scalar_prefetch = 0 : i64, scratch_operands = 0 : i64, tpu.core_type = #tpu.core_type<tc>, window_params = [{transform_indices = @transform_0, window_bounds = array<i64: 16, 32>}, {transform_indices = @transform_1, window_bounds = array<i64: 32, 96>}, {transform_indices = @transform_2, window_bounds = array<i64: 1, 96>}, {transform_indices = @transform_3, window_bounds = array<i64: 16, 96>}]} {
    %c0 = arith.constant 0 : index
    %c0_0 = arith.constant 0 : index
    %0 = vector.load %arg2[%c0, %c0_0] : memref<16x32xf32, #tpu.memory_space<vmem>>, vector<16x32xf32>
    %c0_1 = arith.constant 0 : index
    %c0_2 = arith.constant 0 : index
    %1 = vector.load %arg3[%c0_1, %c0_2] : memref<32x96xf32, #tpu.memory_space<vmem>>, vector<32x96xf32>
    %cst = arith.constant dense<0.000000e+00> : vector<16x96xf32>
    %2 = tpu.matmul %0, %1, %cst {dimension_numbers = #tpu.dot_dimension_numbers<[1], [0], [0], [1], [0, 0, 1, 1], [], []>} : vector<16x32xf32>, vector<32x96xf32>, vector<16x96xf32> -> vector<16x96xf32>
    %c0_3 = arith.constant 0 : index
    %c0_4 = arith.constant 0 : index
    %3 = vector.load %arg4[%c0_3, %c0_4] : memref<1x96xf32, #tpu.memory_space<vmem>>, vector<1x96xf32>
    %4 = vector.broadcast %3 : vector<1x96xf32> to vector<16x96xf32>
    %5 = arith.addf %2, %4 : vector<16x96xf32>
    %c0_5 = arith.constant 0 : index
    %c0_6 = arith.constant 0 : index
    %6 = vector.load %arg5[%c0_5, %c0_6] : memref<16x96xf32, #tpu.memory_space<vmem>>, vector<16x96xf32>
    tpu.vector_store %arg5[%c0_5, %c0_6], %5 {strides = array<i32>} : memref<16x96xf32, #tpu.memory_space<vmem>>, vector<16x96xf32>,
    return
  }
  func.func @transform_0(%arg0: i32, %arg1: i32) -> (i32, i32) {
    %c0_i32 = arith.constant 0 : i32
    %c0_i32_0 = arith.constant 0 : i32
    return %arg0, %c0_i32 : i32, i32
  }
  func.func @transform_1(%arg0: i32, %arg1: i32) -> (i32, i32) {
    %c0_i32 = arith.constant 0 : i32
    %c0_i32_0 = arith.constant 0 : i32
    return %c0_i32, %arg1 : i32, i32
  }
  func.func @transform_2(%arg0: i32, %arg1: i32) -> (i32, i32) {
    %c0_i32 = arith.constant 0 : i32
    %c0_i32_0 = arith.constant 0 : i32
    return %c0_i32, %arg1 : i32, i32
  }
  func.func @transform_3(%arg0: i32, %arg1: i32) -> (i32, i32) {
    %c0_i32 = arith.constant 0 : i32
    return %arg0, %arg1 : i32, i32
  }
}

</mosaic_0001>

<llo_original>
// kernel: tpu_custom_call.1
$region0: #{tpu_custom_call.1}
  #allocation0 [shape = 'u32[]', space=smem, size = 0x4, offset = 0x4, fixed_abs, tag = 'smem constant byte address 0x4 - core index']
  #allocation1 [shape = 'u32[72,128]{1,0:T(1,128)}', space=vmem, size = 0x9000, scoped, tag = 'internal scratch']
  %s0 = inlined_call_operand.hbm [shape: f32[16,32], index: 0, kind: input, shape index: {}]
  %s1 = inlined_call_operand.hbm [shape: f32[32,96], index: 1, kind: input, shape index: {}]
  %s2 = inlined_call_operand.vmem [shape: f32[1,96], index: 2, kind: input, shape index: {}]
  %s3 = inlined_call_operand.hbm [shape: f32[16,96], index: 3, kind: output, shape index: {}]
  %s4 = sld [smem:[#allocation0]]
  $region30: #{tpu_custom_call.1} parent=0
    _
  %s6 = ssub.s32 1, %s4
  %s7 = scalar_select 0, %s6, %s4
  $region1: #{tpu_custom_call.1} parent=0
    #allocation2 [shape = 'u8[8192]{0}', space=vmem, size = 0x2000, scoped, tag = 'input window, operand 0, single buffered']
    #allocation3 [shape = 's32[1]{0}', space=sflag, size = 0x4, scoped, tag = 'scoped memory for tpu_custom_call.1']
    #allocation4 [shape = 's32[1]{0}', space=sflag, size = 0x4, scoped, tag = 'scoped memory for tpu_custom_call.1']
    #allocation5 [shape = 'u8[16384]{0}', space=vmem, size = 0x4000, scoped, tag = 'input window, operand 1, single buffered']
    #allocation6 [shape = 's32[1]{0}', space=sflag, size = 0x4, scoped, tag = 'scoped memory for tpu_custom_call.1']
    #allocation7 [shape = 'u8[8192]{0}', space=vmem, size = 0x2000, scoped, tag = 'output window, operand 0, single buffered']
    %8 = vsyncpa [#allocation3], 0
    %9 = vsyncpa [#allocation6], 0
    %10 = vsyncpa [#allocation4], 0
    // Predicated region
    $region2: #{tpu_custom_call.1} parent=1 // pred_check
      _
    $region3: #{tpu_custom_call.1} parent=1 // pred_check_branch
      %12 = sbr.rel (0) target = $region5
    $region4: #{tpu_custom_call.1} parent=1 // pred_region
      %14 = vsyncadd [#allocation3], 0
      %s15 = sshll.u32 %s0, 4
      %s16 = int_to_ptr.hbm [resolvable:$true] %s15
      %s17 = sshll.u32 [#allocation2], 4
      %s18 = int_to_ptr.vmem [resolvable:$true] %s17
      %23 = dma.hbm_to_vmem [thread:$0]  %s16, 256, %s18, [#allocation3], 128, 128, 8
    $region5: #{tpu_custom_call.1} parent=1 // pred_fallthru
      _
    // Predicated region
    $region6: #{tpu_custom_call.1} parent=1 // pred_check
      _
    $region7: #{tpu_custom_call.1} parent=1 // pred_check_branch
      %25 = sbr.rel (0) target = $region9
    $region8: #{tpu_custom_call.1} parent=1 // pred_region
      %27 = vsyncadd [#allocation6], 0
      %s28 = sshll.u32 %s1, 4
      %s29 = int_to_ptr.hbm [resolvable:$true] %s28
      %s30 = sshll.u32 [#allocation5], 4
      %s31 = int_to_ptr.vmem [resolvable:$true] %s30
      %36 = dma.hbm_to_vmem [thread:$0]  %s29, 512, %s31, [#allocation6], 128, 128, 8
    $region9: #{tpu_custom_call.1} parent=1 // pred_fallthru
      _
    // Predicated region
    $region10: #{tpu_custom_call.1} parent=1 // pred_check
      _
    $region11: #{tpu_custom_call.1} parent=1 // pred_check_branch
      %38 = sbr.rel (0) target = $region13
    $region12: #{tpu_custom_call.1} parent=1 // pred_region
      _
    $region13: #{tpu_custom_call.1} parent=1 // pred_fallthru
      _
    // Predicated region
    $region14: #{tpu_custom_call.1} parent=1 // pred_check
      _
    $region15: #{tpu_custom_call.1} parent=1 // pred_check_branch
      %40 = sbr.rel (0) target = $region17
    $region16: #{tpu_custom_call.1} parent=1 // pred_region
      %42 = dma.done [#allocation3], 256
    $region17: #{tpu_custom_call.1} parent=1 // pred_fallthru
      _
    // Predicated region
    $region18: #{tpu_custom_call.1} parent=1 // pred_check
      _
    $region19: #{tpu_custom_call.1} parent=1 // pred_check_branch
      %44 = sbr.rel (0) target = $region21
    $region20: #{tpu_custom_call.1} parent=1 // pred_region
      %46 = dma.done [#allocation6], 512
    $region21: #{tpu_custom_call.1} parent=1 // pred_fallthru
      _
    %v47 = vld [vmem:[#allocation2] sm:$0xff]
    %v48 = vld [vmem:[#allocation2 + $0x8] sm:$0xff]
    %v49 = vld [vmem:[#allocation5] sm:$0xff]
    %v50 = vld [vmem:[#allocation5 + $0x8] sm:$0xff]
    %v51 = vld [vmem:[#allocation5 + $0x10] sm:$0xff]
    %v52 = vld [vmem:[#allocation5 + $0x18] sm:$0xff]
    %v53 = vld [vmem:[%s2] sm:$0x1]
    %v55 = vperm.slane %v53, 0
    %vm57 = vcmask 261120
    %v59 = vsel %vm57, %v47, 0
    %v62 = vsel %vm57, %v48, 0
    %64 = vmatpush.msra.mxu0 0.0
    %65 = vmatpush.msra.mxu0 0.0
    %66 = vmatpush.msra.mxu0 0.0
    %67 = vmatpush.msra.mxu0 0.0
    %68 = vmatpush.msra.mxu0 0.0
    %69 = vmatpush.msra.mxu0 0.0
    %70 = vmatpush.msra.mxu0 0.0
    %71 = vmatpush.msra.mxu0 0.0
    %72 = vmatpush.msra.mxu0 0.0
    %73 = vmatpush.msra.mxu0 0.0
    %74 = vmatpush.msra.mxu0 0.0
    %75 = vmatpush.msra.mxu0 0.0
    %76 = vmatpush.msra.mxu0 %v52
    %77 = vmatpush.msra.mxu0 %v51
    %78 = vmatpush.msra.mxu0 %v50
    %79 = vmatpush.msra.mxu0 %v49
    %80 = vmatmul.f32.gmra.mxu0 %v59
    %v81 = vpop.f32.mrf.mxu0
    %v82 = vadd.f32 %v55, %v81
    %83 = vmatmul.f32.gmra.mxu0 %v62
    %v84 = vpop.f32.mrf.mxu0
    %v85 = vadd.f32 %v55, %v84
    %86 = vdwg.mxu0
    %vm87 = vcmask 785408
    %88 = vst.msk [vmem:[#allocation7] sm:$0xff] %vm87, %v82
    %89 = vst.msk [vmem:[#allocation7 + $0x8] sm:$0xff] %vm87, %v85
    // Predicated region
    $region22: #{tpu_custom_call.1} parent=1 // pred_check
      _
    $region23: #{tpu_custom_call.1} parent=1 // pred_check_branch
      %91 = sbr.rel (0) target = $region25
    $region24: #{tpu_custom_call.1} parent=1 // pred_region
      %93 = vsyncadd [#allocation4], 0
      %s94 = sshll.u32 [#allocation7], 4
      %s95 = int_to_ptr.vmem [resolvable:$true] %s94
      %s96 = sshll.u32 %s3, 4
      %s97 = int_to_ptr.hbm [resolvable:$true] %s96
      %102 = dma.vmem_to_hbm [thread:$0]  %s95, 256, %s97, [#allocation4], 128, 128, 8
    $region25: #{tpu_custom_call.1} parent=1 // pred_fallthru
      _
    // Predicated region
    $region26: #{tpu_custom_call.1} parent=1 // pred_check
      _
    $region27: #{tpu_custom_call.1} parent=1 // pred_check_branch
      %104 = sbr.rel (0) target = $region29
    $region28: #{tpu_custom_call.1} parent=1 // pred_region
      %106 = dma.done [#allocation4], 256
    $region29: #{tpu_custom_call.1} parent=1 // pred_fallthru
      _
    %107 = vsyncpa [#allocation3], 1
    %108 = vsyncpa [#allocation6], 1
    %109 = vsyncpa [#allocation4], 1

</llo_original>
